<compile_context>
chip_gen: v5e
topology: v5e:2x2
jax: 0.10.0
libtpu: 0.0.40
codegen_flags: <defaults>
</compile_context>

<pallas_src>
import functools
import numpy as np

import jax
import jax.numpy as jnp
from jax import lax
from jax.experimental import pallas as pl
from jax.experimental.pallas import tpu as pltpu


# ------------------------------ Pallas kernel -------------------------------

def _featfuse_kernel(g_ref, w12_ref, bp_ref, fc1w_ref, fc2w_ref, o_ref,
                     *, n, hw, hwp, c1, c2, c3):
    """Whole-batch FeatFuse forward in a single kernel invocation.

    g_ref   : (n*hwp, c1+c2+c3) concat of [conv1-samples | conv2-samples | x3],
              zero rows where a per-image block was padded to hwp rows.
    w12_ref : (c1+c2, c3) stacked 1x1-conv weights [w1; w2].
    bp_ref  : (4, 3*c3) bias pack: rows = b1, b2, fc1_b (padded), fc2_b.
    """
    c12 = c1 + c2
    hid = fc1w_ref.shape[1]

    g = g_ref[...]                                   # (n*hwp, 112)
    w12 = w12_ref[...]                               # (48, 64)
    bp = bp_ref[...]                                 # (4, 192)
    b1 = bp[0:1, 0:c3]
    b2 = bp[1:2, 0:c3]
    fc1_b = bp[2:3, 0:hid]
    fc2_b = bp[3:4, :]

    # --- global average pool (per image) ------------------------------------
    # mean_pixels(conv1(x1)+conv2(x2)+x3) == mean(g[:, :48]) @ w12
    #                                        + mean(g[:, 48:]) + b1 + b2
    # (zero pad rows contribute nothing to the sums; divide by the true hw).
    inv_hw = 1.0 / hw
    gbar = jnp.concatenate(
        [jnp.sum(g[b * hwp:(b + 1) * hwp, :], axis=0, keepdims=True)
         for b in range(n)], axis=0) * inv_hw        # (n, 112)
    pooled = (jnp.dot(gbar[:, 0:c12], w12, preferred_element_type=jnp.float32)
              + gbar[:, c12:] + b1 + b2)             # (n, 64)

    # --- squeeze-excite MLP -> per-image, per-channel branch attention ------
    h = jnp.maximum(
        jnp.dot(pooled, fc1w_ref[...], preferred_element_type=jnp.float32)
        + fc1_b, 0.0)                                # (n, 8)
    z = jnp.dot(h, fc2w_ref[...], preferred_element_type=jnp.float32) + fc2_b
    a1 = z[:, 0:c3]                                  # branch logits, (n, 64) each
    a2 = z[:, c3:2 * c3]
    a3 = z[:, 2 * c3:3 * c3]
    m = jnp.maximum(a1, jnp.maximum(a2, a3))
    e1 = jnp.exp(a1 - m)
    e2 = jnp.exp(a2 - m)
    e3 = jnp.exp(a3 - m)
    inv_den = pl.reciprocal(e1 + e2 + e3, approx=True)   # EUP, (n, 64) only
    att1 = e1 * inv_den
    att2 = e2 * inv_den
    att3 = e3 * inv_den

    # --- attention-weighted fusion ------------------------------------------
    # y1*att1 + y2*att2  ==  g[:, :48] @ (w12 * att-per-column)  + b*att
    # x3*att3 stays an exact element-wise multiply.
    cols = []
    for b in range(n):
        a1b = att1[b:b + 1, :]
        a2b = att2[b:b + 1, :]
        a3b = att3[b:b + 1, :]
        wb = w12 * jnp.concatenate(
            [jnp.broadcast_to(a1b, (c1, c3)),
             jnp.broadcast_to(a2b, (c2, c3))], axis=0)          # (48, 64)
        gb = g[b * hwp:(b + 1) * hwp, :]                        # (hwp, 112)
        ob = (jnp.dot(gb[:, 0:c12], wb, preferred_element_type=jnp.float32)
              + gb[:, c12:] * a3b + b1 * a1b + b2 * a2b)        # (hwp, 64)
        cols.append(ob)
    # One lane-dense (hwp, n*c3) store.
    o_ref[...] = jnp.concatenate(cols, axis=1)


# ------------------------------- glue (JAX) ---------------------------------

def _gather_1x1_inputs(x_nchw, stride, pad):
    """Sample the pixels a 1x1 conv with (stride, pad) reads.

    Returns (N, oh*ow, C) f32 (zeros where the conv samples the zero pad) and
    the output spatial size.  Pure layout glue, fused by XLA under jit."""
    n, c, h, w = x_nchw.shape
    oh = (h + 2 * pad - 1) // stride + 1
    ow = (w + 2 * pad - 1) // stride + 1
    x = jnp.transpose(x_nchw, (0, 2, 3, 1))                   # NHWC
    xp = jnp.pad(x, ((0, 0), (pad, pad), (pad, pad), (0, 0)))
    g = xp[:, 0:stride * (oh - 1) + 1:stride,
           0:stride * (ow - 1) + 1:stride, :]                 # (N, oh, ow, C)
    return g.reshape(n, oh * ow, c).astype(jnp.float32), (oh, ow)


def prepare_featfuse_params(params):
    """One-time parameter folding: stacked conv weights, bias pack, fc weights."""
    f32 = lambda a: jnp.asarray(a, jnp.float32)
    w1 = f32(params["conv_fusion1"]["w"][:, :, 0, 0]).T       # (16, 64)
    w2 = f32(params["conv_fusion2"]["w"][:, :, 0, 0]).T       # (32, 64)
    c3 = w1.shape[1]
    fc1_b = f32(params["fc1"]["b"])                           # (8,)
    fc2_b = f32(params["fc2"]["b"])                           # (192,)
    width = fc2_b.shape[0]                                    # 3*c3
    bpack = jnp.zeros((4, width), jnp.float32)
    bpack = bpack.at[0, :c3].set(f32(params["conv_fusion1"]["b"]))
    bpack = bpack.at[1, :c3].set(f32(params["conv_fusion2"]["b"]))
    bpack = bpack.at[2, :fc1_b.shape[0]].set(fc1_b)
    bpack = bpack.at[3, :].set(fc2_b)
    return {
        "w12": jnp.concatenate([w1, w2], axis=0),             # (48, 64)
        "bpack": bpack,                                       # (4, 192)
        "fc1_w": f32(params["fc1"]["w"]).T,                   # (64, 8)
        "fc2_w": f32(params["fc2"]["w"]).T,                   # (8, 192)
    }


def featfuse_forward_pallas(prep, x1_nchw, x2_nchw, x3_nchw):
    """FeatFuse forward.  Inputs/outputs are PyTorch-style NCHW."""
    n, c3, h3, w3 = x3_nchw.shape
    g1, sp1 = _gather_1x1_inputs(x1_nchw, stride=4, pad=3)
    g2, sp2 = _gather_1x1_inputs(x2_nchw, stride=2, pad=1)
    assert sp1 == (h3, w3) and sp2 == (h3, w3), "branch spatial mismatch"
    hw = h3 * w3
    hwp = ((hw + 7) // 8) * 8                                 # 8-aligned rows/image
    c1, c2 = g1.shape[-1], g2.shape[-1]
    x3f = jnp.transpose(x3_nchw, (0, 2, 3, 1)).reshape(n, hw, c3).astype(jnp.float32)

    # Single packed input slab: (n*hwp, c1+c2+c3), zero rows in the pad.
    gcat = jnp.concatenate([g1, g2, x3f], axis=-1)            # (n, hw, 112)
    gcat = jnp.pad(gcat, ((0, 0), (0, hwp - hw), (0, 0)))
    gcat = gcat.reshape(n * hwp, c1 + c2 + c3)

    kernel = functools.partial(_featfuse_kernel, n=n, hw=hw, hwp=hwp,
                               c1=c1, c2=c2, c3=c3)
    vmem = pl.BlockSpec(memory_space=pltpu.MemorySpace.VMEM)

    # Single grid-less invocation: everything fits VMEM (< 0.1 MiB), so one
    # prologue, one epilogue, zero per-step overhead.
    out2 = pl.pallas_call(
        kernel,
        out_shape=jax.ShapeDtypeStruct((hwp, n * c3), jnp.float32),
        in_specs=[vmem] * 5,
        out_specs=vmem,
    )(gcat, prep["w12"], prep["bpack"], prep["fc1_w"], prep["fc2_w"])

    # Undo the lane-dense layout: (hwp, n*c3) -> (n, hw, c3) -> NCHW.
    out = jnp.transpose(out2.reshape(hwp, n, c3), (1, 0, 2))[:, :hw, :]
    return jnp.transpose(out.reshape(n, h3, w3, c3), (0, 3, 1, 2))


# ------------------------------- parameters ---------------------------------

def _conv1x1_params(key, cin, cout):
    k1, k2 = jax.random.split(key)
    w = jax.random.normal(k1, (cout, cin, 1, 1), jnp.float32) / np.sqrt(cin)
    b = 0.01 * jax.random.normal(k2, (cout,), jnp.float32)
    return {"w": w, "b": b}


def _linear_params(key, fin, fout):
    k1, k2 = jax.random.split(key)
    w = jax.random.normal(k1, (fout, fin), jnp.float32) / np.sqrt(fin)
    b = 0.01 * jax.random.normal(k2, (fout,), jnp.float32)
    return {"w": w, "b": b}


def init_featfuse_params(key):
    k = jax.random.split(key, 4)
    return {
        "conv_fusion1": _conv1x1_params(k[0], 16, 64),   # Conv2d(16, 64, 1, 4, 3)
        "conv_fusion2": _conv1x1_params(k[1], 32, 64),   # Conv2d(32, 64, 1, 2, 1)
        "fc1": _linear_params(k[2], 64, 8),
        "fc2": _linear_params(k[3], 8, 64 * 3),
    }


# --------------------------- plain-JAX reference ----------------------------

def _ref_conv1x1(x, w, b, stride, pad):
    y = lax.conv_general_dilated(
        x, w, (stride, stride), [(pad, pad), (pad, pad)],
        dimension_numbers=("NCHW", "OIHW", "NCHW"),
        precision=lax.Precision.HIGHEST)
    return y + b[None, :, None, None]


def featfuse_forward_ref(params, x1, x2, x3):
    n = x1.shape[0]
    c_out = x3.shape[1]
    y1 = _ref_conv1x1(x1, params["conv_fusion1"]["w"], params["conv_fusion1"]["b"], 4, 3)
    y2 = _ref_conv1x1(x2, params["conv_fusion2"]["w"], params["conv_fusion2"]["b"], 2, 1)
    s = y1 + y2 + x3
    pooled = jnp.mean(s, axis=(2, 3))                               # (B, C)
    h = jnp.maximum(pooled @ params["fc1"]["w"].T + params["fc1"]["b"], 0.0)
    z = h @ params["fc2"]["w"].T + params["fc2"]["b"]               # (B, 3*C)
    a = jax.nn.softmax(z.reshape(n, 3, c_out), axis=1)              # (B, 3, C)
    a1 = a[:, 0][:, :, None, None]
    a2 = a[:, 1][:, :, None, None]
    a3 = a[:, 2][:, :, None, None]
    return y1 * a1 + y2 * a2 + x3 * a3


# ----------------------------------- main ------------------------------------

if __name__ == "__main__":
    root = jax.random.PRNGKey(0)
    kx1, kx2, kx3, kp = jax.random.split(root, 4)

    # Shapes consistent with detection.py's FeatNet outputs feeding FeatFuse:
    # x1: (B,16,16,16) -> conv(1x1, stride 4, pad 3) -> 6x6
    # x2: (B,32, 9, 9) -> conv(1x1, stride 2, pad 1) -> 6x6
    # x3: (B,64, 6, 6)
    x1 = jax.random.normal(kx1, (2, 16, 16, 16), jnp.float32)
    x2 = jax.random.normal(kx2, (2, 32, 9, 9), jnp.float32)
    x3 = jax.random.normal(kx3, (2, 64, 6, 6), jnp.float32)

    params = init_featfuse_params(kp)
    prep = prepare_featfuse_params(params)          # one-time weight folding

    fwd = jax.jit(featfuse_forward_pallas)
    out = jax.block_until_ready(fwd(prep, x1, x2, x3))
    ref = jax.block_until_ready(featfuse_forward_ref(params, x1, x2, x3))

    assert out.shape == (2, 64, 6, 6), out.shape
    np.testing.assert_allclose(np.asarray(out), np.asarray(ref),
                               rtol=2e-2, atol=2e-2)

    print("KERNEL_OK")
</pallas_src>

<mosaic_0001>
module attributes {stable_mosaic.version = 11 : i64} {
  func.func @_featfuse_kernel(%arg0: memref<80x112xf32, #tpu.memory_space<vmem>>, %arg1: memref<48x64xf32, #tpu.memory_space<vmem>>, %arg2: memref<4x192xf32, #tpu.memory_space<vmem>>, %arg3: memref<64x8xf32, #tpu.memory_space<vmem>>, %arg4: memref<8x192xf32, #tpu.memory_space<vmem>>, %arg5: memref<40x128xf32, #tpu.memory_space<vmem>>) attributes {dimension_semantics = [], scalar_prefetch = 0 : i64, scratch_operands = 0 : i64, tpu.core_type = #tpu.core_type<tc>} {
    %c0 = arith.constant 0 : index
    %c0_0 = arith.constant 0 : index
    %0 = vector.load %arg0[%c0, %c0_0] : memref<80x112xf32, #tpu.memory_space<vmem>>, vector<80x112xf32>
    %c0_1 = arith.constant 0 : index
    %c0_2 = arith.constant 0 : index
    %1 = vector.load %arg1[%c0_1, %c0_2] : memref<48x64xf32, #tpu.memory_space<vmem>>, vector<48x64xf32>
    %c0_3 = arith.constant 0 : index
    %c0_4 = arith.constant 0 : index
    %2 = vector.load %arg2[%c0_3, %c0_4] : memref<4x192xf32, #tpu.memory_space<vmem>>, vector<4x192xf32>
    %3 = vector.extract_strided_slice %2 {offsets = [0, 0], sizes = [1, 64], strides = [1, 1]} : vector<4x192xf32> to vector<1x64xf32>
    %4 = vector.extract_strided_slice %2 {offsets = [1, 0], sizes = [1, 64], strides = [1, 1]} : vector<4x192xf32> to vector<1x64xf32>
    %5 = vector.extract_strided_slice %2 {offsets = [2, 0], sizes = [1, 8], strides = [1, 1]} : vector<4x192xf32> to vector<1x8xf32>
    %6 = vector.extract_strided_slice %2 {offsets = [3, 0], sizes = [1, 192], strides = [1, 1]} : vector<4x192xf32> to vector<1x192xf32>
    %7 = vector.extract_strided_slice %0 {offsets = [0, 0], sizes = [40, 112], strides = [1, 1]} : vector<80x112xf32> to vector<40x112xf32>
    %cst = arith.constant dense<0.000000e+00> : vector<112xf32>
    %8 = vector.multi_reduction <add>, %7, %cst [0] : vector<40x112xf32> to vector<112xf32>
    %9 = vector.shape_cast %8 : vector<112xf32> to vector<1x112xf32>
    %10 = vector.extract_strided_slice %0 {offsets = [40, 0], sizes = [40, 112], strides = [1, 1]} : vector<80x112xf32> to vector<40x112xf32>
    %cst_5 = arith.constant dense<0.000000e+00> : vector<112xf32>
    %11 = vector.multi_reduction <add>, %10, %cst_5 [0] : vector<40x112xf32> to vector<112xf32>
    %12 = vector.shape_cast %11 : vector<112xf32> to vector<1x112xf32>
    %13 = tpu.concatenate %9, %12 in 0 : vector<1x112xf32>, vector<1x112xf32> -> vector<2x112xf32>
    %cst_6 = arith.constant 0.027777778 : f32
    %14 = vector.broadcast %cst_6 : f32 to vector<2x112xf32>
    %15 = arith.mulf %13, %14 : vector<2x112xf32>
    %16 = vector.extract_strided_slice %15 {offsets = [0, 0], sizes = [2, 48], strides = [1, 1]} : vector<2x112xf32> to vector<2x48xf32>
    %cst_7 = arith.constant dense<0.000000e+00> : vector<2x64xf32>
    %17 = tpu.matmul %16, %1, %cst_7 {dimension_numbers = #tpu.dot_dimension_numbers<[1], [0], [0], [1], [0, 0, 1, 1], [], []>} : vector<2x48xf32>, vector<48x64xf32>, vector<2x64xf32> -> vector<2x64xf32>
    %18 = vector.extract_strided_slice %15 {offsets = [0, 48], sizes = [2, 64], strides = [1, 1]} : vector<2x112xf32> to vector<2x64xf32>
    %19 = arith.addf %17, %18 : vector<2x64xf32>
    %20 = vector.broadcast %3 : vector<1x64xf32> to vector<2x64xf32>
    %21 = arith.addf %19, %20 : vector<2x64xf32>
    %22 = vector.broadcast %4 : vector<1x64xf32> to vector<2x64xf32>
    %23 = arith.addf %21, %22 : vector<2x64xf32>
    %c0_8 = arith.constant 0 : index
    %c0_9 = arith.constant 0 : index
    %24 = vector.load %arg3[%c0_8, %c0_9] : memref<64x8xf32, #tpu.memory_space<vmem>>, vector<64x8xf32>
    %cst_10 = arith.constant dense<0.000000e+00> : vector<2x8xf32>
    %25 = tpu.matmul %23, %24, %cst_10 {dimension_numbers = #tpu.dot_dimension_numbers<[1], [0], [0], [1], [0, 0, 1, 1], [], []>} : vector<2x64xf32>, vector<64x8xf32>, vector<2x8xf32> -> vector<2x8xf32>
    %26 = vector.broadcast %5 : vector<1x8xf32> to vector<2x8xf32>
    %27 = arith.addf %25, %26 : vector<2x8xf32>
    %cst_11 = arith.constant 0.000000e+00 : f32
    %28 = vector.broadcast %cst_11 : f32 to vector<2x8xf32>
    %29 = arith.maximumf %27, %28 : vector<2x8xf32>
    %c0_12 = arith.constant 0 : index
    %c0_13 = arith.constant 0 : index
    %30 = vector.load %arg4[%c0_12, %c0_13] : memref<8x192xf32, #tpu.memory_space<vmem>>, vector<8x192xf32>
    %cst_14 = arith.constant dense<0.000000e+00> : vector<2x192xf32>
    %31 = tpu.matmul %29, %30, %cst_14 {dimension_numbers = #tpu.dot_dimension_numbers<[1], [0], [0], [1], [0, 0, 1, 1], [], []>} : vector<2x8xf32>, vector<8x192xf32>, vector<2x192xf32> -> vector<2x192xf32>
    %32 = vector.broadcast %6 : vector<1x192xf32> to vector<2x192xf32>
    %33 = arith.addf %31, %32 : vector<2x192xf32>
    %34 = vector.extract_strided_slice %33 {offsets = [0, 0], sizes = [2, 64], strides = [1, 1]} : vector<2x192xf32> to vector<2x64xf32>
    %35 = vector.extract_strided_slice %33 {offsets = [0, 64], sizes = [2, 64], strides = [1, 1]} : vector<2x192xf32> to vector<2x64xf32>
    %36 = vector.extract_strided_slice %33 {offsets = [0, 128], sizes = [2, 64], strides = [1, 1]} : vector<2x192xf32> to vector<2x64xf32>
    %37 = arith.maximumf %35, %36 : vector<2x64xf32>
    %38 = arith.maximumf %34, %37 : vector<2x64xf32>
    %39 = arith.subf %34, %38 : vector<2x64xf32>
    %40 = math.exp %39 : vector<2x64xf32>
    %41 = arith.subf %35, %38 : vector<2x64xf32>
    %42 = math.exp %41 : vector<2x64xf32>
    %43 = arith.subf %36, %38 : vector<2x64xf32>
    %44 = math.exp %43 : vector<2x64xf32>
    %45 = arith.addf %40, %42 : vector<2x64xf32>
    %46 = arith.addf %45, %44 : vector<2x64xf32>
    %47 = tpu.reciprocal %46 {approx = true} : vector<2x64xf32> -> vector<2x64xf32>
    %48 = arith.mulf %40, %47 : vector<2x64xf32>
    %49 = arith.mulf %42, %47 : vector<2x64xf32>
    %50 = arith.mulf %44, %47 : vector<2x64xf32>
    %51 = vector.extract_strided_slice %48 {offsets = [0, 0], sizes = [1, 64], strides = [1, 1]} : vector<2x64xf32> to vector<1x64xf32>
    %52 = vector.extract_strided_slice %49 {offsets = [0, 0], sizes = [1, 64], strides = [1, 1]} : vector<2x64xf32> to vector<1x64xf32>
    %53 = vector.extract_strided_slice %50 {offsets = [0, 0], sizes = [1, 64], strides = [1, 1]} : vector<2x64xf32> to vector<1x64xf32>
    %54 = vector.shape_cast %51 : vector<1x64xf32> to vector<1x64xf32>
    %55 = vector.broadcast %54 : vector<1x64xf32> to vector<16x64xf32>
    %56 = vector.shape_cast %52 : vector<1x64xf32> to vector<1x64xf32>
    %57 = vector.broadcast %56 : vector<1x64xf32> to vector<32x64xf32>
    %58 = tpu.concatenate %55, %57 in 0 : vector<16x64xf32>, vector<32x64xf32> -> vector<48x64xf32>
    %59 = arith.mulf %1, %58 : vector<48x64xf32>
    %60 = vector.extract_strided_slice %0 {offsets = [0, 0], sizes = [40, 112], strides = [1, 1]} : vector<80x112xf32> to vector<40x112xf32>
    %61 = vector.extract_strided_slice %60 {offsets = [0, 0], sizes = [40, 48], strides = [1, 1]} : vector<40x112xf32> to vector<40x48xf32>
    %cst_15 = arith.constant dense<0.000000e+00> : vector<40x64xf32>
    %62 = tpu.matmul %61, %59, %cst_15 {dimension_numbers = #tpu.dot_dimension_numbers<[1], [0], [0], [1], [0, 0, 1, 1], [], []>} : vector<40x48xf32>, vector<48x64xf32>, vector<40x64xf32> -> vector<40x64xf32>
    %63 = vector.extract_strided_slice %60 {offsets = [0, 48], sizes = [40, 64], strides = [1, 1]} : vector<40x112xf32> to vector<40x64xf32>
    %64 = vector.broadcast %53 : vector<1x64xf32> to vector<40x64xf32>
    %65 = arith.mulf %63, %64 : vector<40x64xf32>
    %66 = arith.addf %62, %65 : vector<40x64xf32>
    %67 = arith.mulf %3, %51 : vector<1x64xf32>
    %68 = vector.broadcast %67 : vector<1x64xf32> to vector<40x64xf32>
    %69 = arith.addf %66, %68 : vector<40x64xf32>
    %70 = arith.mulf %4, %52 : vector<1x64xf32>
    %71 = vector.broadcast %70 : vector<1x64xf32> to vector<40x64xf32>
    %72 = arith.addf %69, %71 : vector<40x64xf32>
    %73 = vector.extract_strided_slice %48 {offsets = [1, 0], sizes = [1, 64], strides = [1, 1]} : vector<2x64xf32> to vector<1x64xf32>
    %74 = vector.extract_strided_slice %49 {offsets = [1, 0], sizes = [1, 64], strides = [1, 1]} : vector<2x64xf32> to vector<1x64xf32>
    %75 = vector.extract_strided_slice %50 {offsets = [1, 0], sizes = [1, 64], strides = [1, 1]} : vector<2x64xf32> to vector<1x64xf32>
    %76 = vector.shape_cast %73 : vector<1x64xf32> to vector<1x64xf32>
    %77 = vector.broadcast %76 : vector<1x64xf32> to vector<16x64xf32>
    %78 = vector.shape_cast %74 : vector<1x64xf32> to vector<1x64xf32>
    %79 = vector.broadcast %78 : vector<1x64xf32> to vector<32x64xf32>
    %80 = tpu.concatenate %77, %79 in 0 : vector<16x64xf32>, vector<32x64xf32> -> vector<48x64xf32>
    %81 = arith.mulf %1, %80 : vector<48x64xf32>
    %82 = vector.extract_strided_slice %0 {offsets = [40, 0], sizes = [40, 112], strides = [1, 1]} : vector<80x112xf32> to vector<40x112xf32>
    %83 = vector.extract_strided_slice %82 {offsets = [0, 0], sizes = [40, 48], strides = [1, 1]} : vector<40x112xf32> to vector<40x48xf32>
    %cst_16 = arith.constant dense<0.000000e+00> : vector<40x64xf32>
    %84 = tpu.matmul %83, %81, %cst_16 {dimension_numbers = #tpu.dot_dimension_numbers<[1], [0], [0], [1], [0, 0, 1, 1], [], []>} : vector<40x48xf32>, vector<48x64xf32>, vector<40x64xf32> -> vector<40x64xf32>
    %85 = vector.extract_strided_slice %82 {offsets = [0, 48], sizes = [40, 64], strides = [1, 1]} : vector<40x112xf32> to vector<40x64xf32>
    %86 = vector.broadcast %75 : vector<1x64xf32> to vector<40x64xf32>
    %87 = arith.mulf %85, %86 : vector<40x64xf32>
    %88 = arith.addf %84, %87 : vector<40x64xf32>
    %89 = arith.mulf %3, %73 : vector<1x64xf32>
    %90 = vector.broadcast %89 : vector<1x64xf32> to vector<40x64xf32>
    %91 = arith.addf %88, %90 : vector<40x64xf32>
    %92 = arith.mulf %4, %74 : vector<1x64xf32>
    %93 = vector.broadcast %92 : vector<1x64xf32> to vector<40x64xf32>
    %94 = arith.addf %91, %93 : vector<40x64xf32>
    %95 = tpu.concatenate %72, %94 in 1 : vector<40x64xf32>, vector<40x64xf32> -> vector<40x128xf32>
    %c0_17 = arith.constant 0 : index
    %c0_18 = arith.constant 0 : index
    %96 = vector.load %arg5[%c0_17, %c0_18] : memref<40x128xf32, #tpu.memory_space<vmem>>, vector<40x128xf32>
    tpu.vector_store %arg5[%c0_17, %c0_18], %95 {strides = array<i32>} : memref<40x128xf32, #tpu.memory_space<vmem>>, vector<40x128xf32>,
    return
  }
}

</mosaic_0001>

<llo_original>
// kernel: featfuse_forward_pallas.1
$region0: #{featfuse_forward_pallas.1}
  #allocation0 [shape = 'u32[]', space=smem, size = 0x4, offset = 0x4, fixed_abs, tag = 'smem constant byte address 0x4 - core index']
  #allocation1 [shape = 'u32[72,128]{1,0:T(1,128)}', space=vmem, size = 0x9000, scoped, tag = 'internal scratch']
  %s0 = inlined_call_operand.vmem [shape: f32[80,112], index: 0, kind: input, shape index: {}]
  %s1 = inlined_call_operand.vmem [shape: f32[48,64], index: 1, kind: input, shape index: {}]
  %s2 = inlined_call_operand.vmem [shape: f32[4,192], index: 2, kind: input, shape index: {}]
  %s3 = inlined_call_operand.vmem [shape: f32[64,8], index: 3, kind: input, shape index: {}]
  %s4 = inlined_call_operand.vmem [shape: f32[8,192], index: 4, kind: input, shape index: {}]
  %s5 = inlined_call_operand.vmem [shape: f32[40,128], index: 5, kind: output, shape index: {}]
  %s6 = sld [smem:[#allocation0]]
  $region30: #{featfuse_forward_pallas.1} parent=0
    _
  %s8 = ssub.s32 1, %s6
  %s9 = scalar_select 0, %s8, %s6
  // Predicated region
  $region2: #{featfuse_forward_pallas.1} parent=0 // pred_check
    _
  $region3: #{featfuse_forward_pallas.1} parent=0 // pred_check_branch
    %11 = sbr.rel (0) target = $region5
  $region4: #{featfuse_forward_pallas.1} parent=0 // pred_region
    _
  $region5: #{featfuse_forward_pallas.1} parent=0 // pred_fallthru
    _
  // Predicated region
  $region6: #{featfuse_forward_pallas.1} parent=0 // pred_check
    _
  $region7: #{featfuse_forward_pallas.1} parent=0 // pred_check_branch
    %13 = sbr.rel (0) target = $region9
  $region8: #{featfuse_forward_pallas.1} parent=0 // pred_region
    _
  $region9: #{featfuse_forward_pallas.1} parent=0 // pred_fallthru
    _
  // Predicated region
  $region10: #{featfuse_forward_pallas.1} parent=0 // pred_check
    _
  $region11: #{featfuse_forward_pallas.1} parent=0 // pred_check_branch
    %15 = sbr.rel (0) target = $region13
  $region12: #{featfuse_forward_pallas.1} parent=0 // pred_region
    _
  $region13: #{featfuse_forward_pallas.1} parent=0 // pred_fallthru
    _
  // Predicated region
  $region14: #{featfuse_forward_pallas.1} parent=0 // pred_check
    _
  $region15: #{featfuse_forward_pallas.1} parent=0 // pred_check_branch
    %17 = sbr.rel (0) target = $region17
  $region16: #{featfuse_forward_pallas.1} parent=0 // pred_region
    _
  $region17: #{featfuse_forward_pallas.1} parent=0 // pred_fallthru
    _
  // Predicated region
  $region18: #{featfuse_forward_pallas.1} parent=0 // pred_check
    _
  $region19: #{featfuse_forward_pallas.1} parent=0 // pred_check_branch
    %19 = sbr.rel (0) target = $region21
  $region20: #{featfuse_forward_pallas.1} parent=0 // pred_region
    _
  $region21: #{featfuse_forward_pallas.1} parent=0 // pred_fallthru
    _
  %v20 = vld [vmem:[%s0] sm:$0xff]
  %v21 = vld [vmem:[%s0 + $0x8] sm:$0xff]
  %v22 = vld [vmem:[%s0 + $0x10] sm:$0xff]
  %v23 = vld [vmem:[%s0 + $0x18] sm:$0xff]
  %v24 = vld [vmem:[%s0 + $0x20] sm:$0xff]
  %v25 = vld [vmem:[%s0 + $0x28] sm:$0xff]
  %v26 = vld [vmem:[%s0 + $0x30] sm:$0xff]
  %v27 = vld [vmem:[%s0 + $0x38] sm:$0xff]
  %v28 = vld [vmem:[%s0 + $0x40] sm:$0xff]
  %v29 = vld [vmem:[%s0 + $0x48] sm:$0xff]
  %v30 = vld [vmem:[%s1] sm:$0xff]
  %v31 = vld [vmem:[%s1 + $0x8] sm:$0xff]
  %v32 = vld [vmem:[%s1 + $0x10] sm:$0xff]
  %v33 = vld [vmem:[%s1 + $0x18] sm:$0xff]
  %v34 = vld [vmem:[%s1 + $0x20] sm:$0xff]
  %v35 = vld [vmem:[%s1 + $0x28] sm:$0xff]
  %v36 = vld [vmem:[%s2] sm:$0xff]
  %vm37 = vcmask 916480
  %v38 = vsel %vm37, %v20, 0.0
  %v39 = vsel %vm37, %v21, 0.0
  %v40 = vadd.f32 %v38, %v39
  %v41 = vsel %vm37, %v22, 0.0
  %v42 = vadd.f32 %v40, %v41
  %v43 = vsel %vm37, %v23, 0.0
  %v44 = vadd.f32 %v42, %v43
  %v45 = vsel %vm37, %v24, 0.0
  %v46 = vadd.f32 %v44, %v45
  %v47 = vrot.slane %v46, 4
  %v48 = vadd.f32 %v46, %v47
  %v49 = vrot.slane %v48, 2
  %v50 = vadd.f32 %v48, %v49
  %v51 = vrot.slane %v50, 1
  %v52 = vadd.f32 %v50, %v51
  %v53 = vsel %vm37, %v25, 0.0
  %v54 = vsel %vm37, %v26, 0.0
  %v55 = vadd.f32 %v53, %v54
  %v56 = vsel %vm37, %v27, 0.0
  %v57 = vadd.f32 %v55, %v56
  %v58 = vsel %vm37, %v28, 0.0
  %v59 = vadd.f32 %v57, %v58
  %v60 = vsel %vm37, %v29, 0.0
  %v61 = vadd.f32 %v59, %v60
  %v62 = vrot.slane %v61, 4
  %v63 = vadd.f32 %v61, %v62
  %v64 = vrot.slane %v63, 2
  %v65 = vadd.f32 %v63, %v64
  %v66 = vrot.slane %v65, 1
  %v67 = vadd.f32 %v65, %v66
  %vm68 = vcmask 1040384
  %v69 = vsel %vm68, %v52, %v67
  %v70 = vmul.f32 %v69, 0.027777778
  %72 = vrot.lane.b32.xlu0 %v70, 80
  %v73 = vpop.permute.xlu0 %72
  %vm75 = vcmask 392192
  %v76 = vsel %vm75, %v70, 0
  %78 = vmatpush.msra.mxu0 0.0
  %79 = vmatpush.msra.mxu0 0.0
  %80 = vmatpush.msra.mxu0 0.0
  %81 = vmatpush.msra.mxu0 0.0
  %82 = vmatpush.msra.mxu0 0.0
  %83 = vmatpush.msra.mxu0 0.0
  %84 = vmatpush.msra.mxu0 0.0
  %85 = vmatpush.msra.mxu0 0.0
  %86 = vmatpush.msra.mxu0 0.0
  %87 = vmatpush.msra.mxu0 0.0
  %88 = vmatpush.msra.mxu0 %v35
  %89 = vmatpush.msra.mxu0 %v34
  %90 = vmatpush.msra.mxu0 %v33
  %91 = vmatpush.msra.mxu0 %v32
  %92 = vmatpush.msra.mxu0 %v31
  %93 = vmatpush.msra.mxu0 %v30
  %94 = vmatmul.f32.gmra.mxu0 %v76
  %v95 = vpop.f32.mrf.mxu0
  %v96 = vadd.f32 %v73, %v95
  %97 = vdwg.mxu0
  %v98 = vperm.slane %v36, 0
  %v99 = vadd.f32 %v96, %v98
  %v100 = vperm.slane %v36, 1
  %v101 = vadd.f32 %v99, %v100
  %v102 = vld [vmem:[%s3] sm:$0xff]
  %v103 = vld [vmem:[%s3 + $0x8] sm:$0xff]
  %v104 = vld [vmem:[%s3 + $0x10] sm:$0xff]
  %v105 = vld [vmem:[%s3 + $0x18] sm:$0xff]
  %v106 = vld [vmem:[%s3 + $0x20] sm:$0xff]
  %v107 = vld [vmem:[%s3 + $0x28] sm:$0xff]
  %v108 = vld [vmem:[%s3 + $0x30] sm:$0xff]
  %v109 = vld [vmem:[%s3 + $0x38] sm:$0xff]
  %v110 = vperm.slane %v36, 2
  %vm111 = vcmask 523264
  %v113 = vsel %vm111, %v101, 0
  %115 = vmatpush.msra.mxu0 0.0
  %116 = vmatpush.msra.mxu0 0.0
  %117 = vmatpush.msra.mxu0 0.0
  %118 = vmatpush.msra.mxu0 0.0
  %119 = vmatpush.msra.mxu0 0.0
  %120 = vmatpush.msra.mxu0 0.0
  %121 = vmatpush.msra.mxu0 0.0
  %122 = vmatpush.msra.mxu0 0.0
  %123 = vmatpush.msra.mxu0 %v109
  %124 = vmatpush.msra.mxu0 %v108
  %125 = vmatpush.msra.mxu0 %v107
  %126 = vmatpush.msra.mxu0 %v106
  %127 = vmatpush.msra.mxu0 %v105
  %128 = vmatpush.msra.mxu0 %v104
  %129 = vmatpush.msra.mxu0 %v103
  %130 = vmatpush.msra.mxu0 %v102
  %131 = vmatmul.f32.gmra.mxu0 %v113
  %v132 = vpop.f32.mrf.mxu0
  %v133 = vadd.f32 %v110, %v132
  %134 = vdwg.mxu0
  %v135 = vmax.f32 %v133, 0.0
  %v136 = vld [vmem:[%s4] sm:$0xff]
  %v137 = vld [vmem:[%s4 + $0x8] sm:$0xff]
  %v139 = vperm.slane %v36, 3
  %v140 = vperm.slane %v36, 7
  %v143 = vperm.slane %v139, 3
  %v144 = vperm.slane %v140, 3
  %vm145 = vcmask 64512
  %v147 = vsel %vm145, %v135, 0
  %149 = vmatpush.msra.mxu0 0.0
  %150 = vmatpush.msra.mxu0 0.0
  %151 = vmatpush.msra.mxu0 0.0
  %152 = vmatpush.msra.mxu0 0.0
  %153 = vmatpush.msra.mxu0 0.0
  %154 = vmatpush.msra.mxu0 0.0
  %155 = vmatpush.msra.mxu0 0.0
  %156 = vmatpush.msra.mxu0 0.0
  %157 = vmatpush.msra.mxu0 0.0
  %158 = vmatpush.msra.mxu0 0.0
  %159 = vmatpush.msra.mxu0 0.0
  %160 = vmatpush.msra.mxu0 0.0
  %161 = vmatpush.msra.mxu0 0.0
  %162 = vmatpush.msra.mxu0 0.0
  %163 = vmatpush.msra.mxu0 0.0
  %164 = vmatpush.msra.mxu0 %v136
  %165 = vmatmul.f32.gmra.mxu0 %v147
  %v166 = vpop.f32.mrf.mxu0
  %v167 = vadd.f32 %v143, %v166
  %168 = vdwg.mxu0
  %169 = vmatpush.msra.mxu0 0.0
  %170 = vmatpush.msra.mxu0 0.0
  %171 = vmatpush.msra.mxu0 0.0
  %172 = vmatpush.msra.mxu0 0.0
  %173 = vmatpush.msra.mxu0 0.0
  %174 = vmatpush.msra.mxu0 0.0
  %175 = vmatpush.msra.mxu0 0.0
  %176 = vmatpush.msra.mxu0 0.0
  %177 = vmatpush.msra.mxu0 0.0
  %178 = vmatpush.msra.mxu0 0.0
  %179 = vmatpush.msra.mxu0 0.0
  %180 = vmatpush.msra.mxu0 0.0
  %181 = vmatpush.msra.mxu0 0.0
  %182 = vmatpush.msra.mxu0 0.0
  %183 = vmatpush.msra.mxu0 0.0
  %184 = vmatpush.msra.mxu0 %v137
  %185 = vmatmul.f32.gmra.mxu0 %v147
  %v186 = vpop.f32.mrf.mxu0
  %v187 = vadd.f32 %v144, %v186
  %188 = vdwg.mxu0
  %190 = vrot.lane.b32.xlu0 %v187, 64
  %v191 = vpop.permute.xlu0 %190
  %v193 = vmax.f32 %v167, %v191
  %195 = vrot.lane.b32.xlu0 %v193, 64
  %v196 = vpop.permute.xlu0 %195
  %v198 = vmax.f32 %v167, %v196
  %v199 = vsub.f32 %v167, %v198
  %v200 = vmul.f32 %v199, 1.442695
  %v201 = vpow.pop %v200
  %203 = vrot.lane.b32.xlu0 %v198, 64
  %v204 = vpop.permute.xlu0 %203
  %v206 = vsub.f32 %v167, %v204
  %v207 = vmul.f32 %v206, 1.442695
  %v208 = vpow.pop %v207
  %v209 = vsub.f32 %v187, %v198
  %v210 = vmul.f32 %v209, 1.442695
  %v211 = vpow.pop %v210
  %213 = vrot.lane.b32.xlu0 %v208, 64
  %v214 = vpop.permute.xlu0 %213
  %v216 = vadd.f32 %v201, %v214
  %v217 = vadd.f32 %v216, %v211
  %v218 = vrcp.pop %v217
  %v219 = vmul.f32 %v201, %v218
  %221 = vrot.lane.b32.xlu0 %v218, 64
  %v222 = vpop.permute.xlu0 %221
  %v224 = vmul.f32 %v208, %v222
  %v225 = vmul.f32 %v211, %v218
  %v226 = vperm.slane %v219, 0
  %v227 = vperm.slane %v224, 0
  %229 = vrot.lane.b32.xlu0 %v227, 64
  %v230 = vpop.permute.xlu0 %229
  %v232 = vmul.f32 %v30, %v226
  %v233 = vmul.f32 %v31, %v226
  %v234 = vmul.f32 %v32, %v230
  %v235 = vmul.f32 %v33, %v230
  %v236 = vmul.f32 %v34, %v230
  %v237 = vmul.f32 %v35, %v230
  %v238 = vperm.slane %v225, 0
  %240 = vrot.lane.b32.xlu0 %v238, 48
  %v241 = vpop.permute.xlu0 %240
  %v243 = vmul.f32 %v20, %v241
  %v244 = vmul.f32 %v21, %v241
  %v245 = vmul.f32 %v22, %v241
  %v246 = vmul.f32 %v23, %v241
  %v247 = vmul.f32 %v24, %v241
  %253 = vrot.lane.b32.xlu0 %v243, 80
  %v254 = vpop.permute.xlu0 %253
  %255 = vrot.lane.b32.xlu0 %v244, 80
  %v256 = vpop.permute.xlu0 %255
  %257 = vrot.lane.b32.xlu0 %v245, 80
  %v258 = vpop.permute.xlu0 %257
  %259 = vrot.lane.b32.xlu0 %v246, 80
  %v260 = vpop.permute.xlu0 %259
  %261 = vrot.lane.b32.xlu0 %v247, 80
  %v262 = vpop.permute.xlu0 %261
  %v269 = vsel %vm75, %v20, 0
  %v272 = vsel %vm75, %v21, 0
  %v275 = vsel %vm75, %v22, 0
  %v278 = vsel %vm75, %v23, 0
  %v281 = vsel %vm75, %v24, 0
  %283 = vmatpush.msra.mxu0 0.0
  %284 = vmatpush.msra.mxu0 0.0
  %285 = vmatpush.msra.mxu0 0.0
  %286 = vmatpush.msra.mxu0 0.0
  %287 = vmatpush.msra.mxu0 0.0
  %288 = vmatpush.msra.mxu0 0.0
  %289 = vmatpush.msra.mxu0 0.0
  %290 = vmatpush.msra.mxu0 0.0
  %291 = vmatpush.msra.mxu0 0.0
  %292 = vmatpush.msra.mxu0 0.0
  %293 = vmatpush.msra.mxu0 %v237
  %294 = vmatpush.msra.mxu0 %v236
  %295 = vmatpush.msra.mxu0 %v235
  %296 = vmatpush.msra.mxu0 %v234
  %297 = vmatpush.msra.mxu0 %v233
  %298 = vmatpush.msra.mxu0 %v232
  %299 = vmatmul.f32.gmra.mxu0 %v269
  %v300 = vpop.f32.mrf.mxu0
  %v301 = vadd.f32 %v254, %v300
  %302 = vmatmul.f32.gmra.mxu0 %v272
  %v303 = vpop.f32.mrf.mxu0
  %v304 = vadd.f32 %v256, %v303
  %305 = vmatmul.f32.gmra.mxu0 %v275
  %v306 = vpop.f32.mrf.mxu0
  %v307 = vadd.f32 %v258, %v306
  %308 = vmatmul.f32.gmra.mxu0 %v278
  %v309 = vpop.f32.mrf.mxu0
  %v310 = vadd.f32 %v260, %v309
  %311 = vmatmul.f32.gmra.mxu0 %v281
  %v312 = vpop.f32.mrf.mxu0
  %v313 = vadd.f32 %v262, %v312
  %314 = vdwg.mxu0
  %v315 = vmul.f32 %v36, %v219
  %v316 = vperm.slane %v315, 0
  %v317 = vadd.f32 %v301, %v316
  %v318 = vadd.f32 %v304, %v316
  %v319 = vadd.f32 %v307, %v316
  %v320 = vadd.f32 %v310, %v316
  %v321 = vadd.f32 %v313, %v316
  %v323 = vrot.slane %v224, 7
  %324 = vrot.lane.b32.xlu0 %v323, 64
  %v325 = vpop.permute.xlu0 %324
  %v327 = vmul.f32 %v36, %v325
  %v328 = vperm.slane %v327, 1
  %v329 = vadd.f32 %v317, %v328
  %v330 = vadd.f32 %v318, %v328
  %v331 = vadd.f32 %v319, %v328
  %v332 = vadd.f32 %v320, %v328
  %v333 = vadd.f32 %v321, %v328
  %v334 = vperm.slane %v219, 1
  %v335 = vperm.slane %v224, 1
  %337 = vrot.lane.b32.xlu0 %v335, 64
  %v338 = vpop.permute.xlu0 %337
  %v340 = vmul.f32 %v30, %v334
  %v341 = vmul.f32 %v31, %v334
  %v342 = vmul.f32 %v32, %v338
  %v343 = vmul.f32 %v33, %v338
  %v344 = vmul.f32 %v34, %v338
  %v345 = vmul.f32 %v35, %v338
  %v346 = vperm.slane %v225, 1
  %348 = vrot.lane.b32.xlu0 %v346, 48
  %v349 = vpop.permute.xlu0 %348
  %v351 = vmul.f32 %v25, %v349
  %v352 = vmul.f32 %v26, %v349
  %v353 = vmul.f32 %v27, %v349
  %v354 = vmul.f32 %v28, %v349
  %v355 = vmul.f32 %v29, %v349
  %361 = vrot.lane.b32.xlu0 %v351, 80
  %v362 = vpop.permute.xlu0 %361
  %363 = vrot.lane.b32.xlu0 %v352, 80
  %v364 = vpop.permute.xlu0 %363
  %365 = vrot.lane.b32.xlu0 %v353, 80
  %v366 = vpop.permute.xlu0 %365
  %367 = vrot.lane.b32.xlu0 %v354, 80
  %v368 = vpop.permute.xlu0 %367
  %369 = vrot.lane.b32.xlu0 %v355, 80
  %v370 = vpop.permute.xlu0 %369
  %v377 = vsel %vm75, %v25, 0
  %v380 = vsel %vm75, %v26, 0
  %v383 = vsel %vm75, %v27, 0
  %v386 = vsel %vm75, %v28, 0
  %v389 = vsel %vm75, %v29, 0
  %391 = vmatpush.msra.mxu0 0.0
  %392 = vmatpush.msra.mxu0 0.0
  %393 = vmatpush.msra.mxu0 0.0
  %394 = vmatpush.msra.mxu0 0.0
  %395 = vmatpush.msra.mxu0 0.0
  %396 = vmatpush.msra.mxu0 0.0
  %397 = vmatpush.msra.mxu0 0.0
  %398 = vmatpush.msra.mxu0 0.0
  %399 = vmatpush.msra.mxu0 0.0
  %400 = vmatpush.msra.mxu0 0.0
  %401 = vmatpush.msra.mxu0 %v345
  %402 = vmatpush.msra.mxu0 %v344
  %403 = vmatpush.msra.mxu0 %v343
  %404 = vmatpush.msra.mxu0 %v342
  %405 = vmatpush.msra.mxu0 %v341
  %406 = vmatpush.msra.mxu0 %v340
  %407 = vmatmul.f32.gmra.mxu0 %v377
  %v408 = vpop.f32.mrf.mxu0
  %v409 = vadd.f32 %v362, %v408
  %410 = vmatmul.f32.gmra.mxu0 %v380
  %v411 = vpop.f32.mrf.mxu0
  %v412 = vadd.f32 %v364, %v411
  %413 = vmatmul.f32.gmra.mxu0 %v383
  %v414 = vpop.f32.mrf.mxu0
  %v415 = vadd.f32 %v366, %v414
  %416 = vmatmul.f32.gmra.mxu0 %v386
  %v417 = vpop.f32.mrf.mxu0
  %v418 = vadd.f32 %v368, %v417
  %419 = vmatmul.f32.gmra.mxu0 %v389
  %v420 = vpop.f32.mrf.mxu0
  %v421 = vadd.f32 %v370, %v420
  %422 = vdwg.mxu0
  %v424 = vrot.slane %v219, 5
  %v425 = vrot.slane %v424, 4
  %v427 = vmul.f32 %v36, %v425
  %v428 = vperm.slane %v427, 0
  %v429 = vadd.f32 %v409, %v428
  %v430 = vadd.f32 %v412, %v428
  %v431 = vadd.f32 %v415, %v428
  %v432 = vadd.f32 %v418, %v428
  %v433 = vadd.f32 %v421, %v428
  %434 = vrot.lane.b32.xlu0 %v224, 64
  %v435 = vpop.permute.xlu0 %434
  %v437 = vmul.f32 %v36, %v435
  %v438 = vperm.slane %v437, 1
  %v439 = vadd.f32 %v429, %v438
  %v440 = vadd.f32 %v430, %v438
  %v441 = vadd.f32 %v431, %v438
  %v442 = vadd.f32 %v432, %v438
  %v443 = vadd.f32 %v433, %v438
  %449 = vrot.lane.b32.xlu0 %v439, 64
  %v450 = vpop.permute.xlu0 %449
  %451 = vrot.lane.b32.xlu0 %v440, 64
  %v452 = vpop.permute.xlu0 %451
  %453 = vrot.lane.b32.xlu0 %v441, 64
  %v454 = vpop.permute.xlu0 %453
  %455 = vrot.lane.b32.xlu0 %v442, 64
  %v456 = vpop.permute.xlu0 %455
  %457 = vrot.lane.b32.xlu0 %v443, 64
  %v458 = vpop.permute.xlu0 %457
  %v464 = vsel %vm111, %v329, %v450
  %v465 = vsel %vm111, %v330, %v452
  %v466 = vsel %vm111, %v331, %v454
  %v467 = vsel %vm111, %v332, %v456
  %v468 = vsel %vm111, %v333, %v458
  %469 = vst [vmem:[%s5] sm:$0xff] %v464
  %470 = vst [vmem:[%s5 + $0x8] sm:$0xff] %v465
  %471 = vst [vmem:[%s5 + $0x10] sm:$0xff] %v466
  %472 = vst [vmem:[%s5 + $0x18] sm:$0xff] %v467
  %473 = vst [vmem:[%s5 + $0x20] sm:$0xff] %v468
  // Predicated region
  $region22: #{featfuse_forward_pallas.1} parent=0 // pred_check
    _
  $region23: #{featfuse_forward_pallas.1} parent=0 // pred_check_branch
    %475 = sbr.rel (0) target = $region25
  $region24: #{featfuse_forward_pallas.1} parent=0 // pred_region
    _
  $region25: #{featfuse_forward_pallas.1} parent=0 // pred_fallthru
    _
  // Predicated region
  $region26: #{featfuse_forward_pallas.1} parent=0 // pred_check
    _
  $region27: #{featfuse_forward_pallas.1} parent=0 // pred_check_branch
    %477 = sbr.rel (0) target = $region29
  $region28: #{featfuse_forward_pallas.1} parent=0 // pred_region
    _
  $region29: #{featfuse_forward_pallas.1} parent=0 // pred_fallthru
    _

</llo_original>
